<compile_context>
chip_gen: v6e
topology: v6e:2x2x1
jax: 0.10.0
libtpu: 0.0.40
codegen_flags: <defaults>
</compile_context>

<pallas_src>
import math

import jax
import jax.numpy as jnp
from jax.experimental import pallas as pl
from jax.experimental.pallas import tpu as pltpu


_SUBLANE = 16                      # row quantum: satisfies f32 (8,128) and bf16 (16,128)
_VMEM_BUDGET = 12 * 1024 * 1024    # conservative live-buffer budget (v5e/v6e/v7x safe)


def _round_up(x, m):
    return -(-x // m) * m


def _affine_kernel(stride_ref, t1_ref, t2_ref, out_ref):
    """pos=None path.  angle = A(fine, precomputed basis) + B(coarse, per tile).

    stride_ref : VMEM (1, lanes)  f32   tile_rows*G*inv_freq per lane
    t1_ref     : VMEM (tr, lanes) f32   scale * {sin A | cos A}   (sin/cos lanes)
    t2_ref     : VMEM (tr, lanes) f32   scale * {cos A | -sin A}
    out_ref    : VMEM (tr, lanes)       output tile (lanes = G*dim, 128-aligned)
    """
    b = stride_ref[...] * pl.program_id(0).astype(jnp.float32)        # (1, lanes)
    cb = jnp.cos(b)                                                    # (1, lanes) only
    sb = jnp.sin(b)
    # sin(A+B) = sinA*cosB + cosA*sinB ; cos(A+B) = cosA*cosB - sinA*sinB
    # -> uniformly T1*cosB + T2*sinB with T1/T2 chosen per lane (precomputed).
    out_ref[...] = (t1_ref[...] * cb + t2_ref[...] * sb).astype(out_ref.dtype)


def _pos_kernel(scale_ref, pos_ref, inv_freq_ref, out_ref):
    """User-supplied pos path (no affine structure -> exact sin/cos).

    scale_ref    : SMEM (1,)        f32
    pos_ref      : VMEM (ts, 1)     f32  (already offset by seq_start)
    inv_freq_ref : VMEM (1, half)   f32
    out_ref      : VMEM (ts, dim)        output tile
    """
    half = inv_freq_ref.shape[1]
    emb = pos_ref[...] * inv_freq_ref[...]                             # (ts, half)
    s = scale_ref[0]
    sin_part = (jnp.sin(emb) * s).astype(out_ref.dtype)
    cos_part = (jnp.cos(emb) * s).astype(out_ref.dtype)
    if half % 128 == 0:
        # two aligned, unmasked slab stores (no concatenate relayout)
        out_ref[:, :half] = sin_part
        out_ref[:, half:] = cos_part
    else:
        out_ref[...] = jnp.concatenate([sin_part, cos_part], axis=-1)


def _pick_tile_rows(rows_needed, lane_width):
    """Rows per output tile.

    Keeps ~6 live f32 buffers of tile size (out double-buffer + resident
    T1/T2 basis, counted conservatively) under ~12 MiB so default scoped-VMEM
    limits fit on v5e/v6e/v7x, and guarantees >= 2 grid steps when there is
    enough work so the "parallel" axis can shard across v7x's two TensorCores.
    """
    per_row_bytes = (6 * lane_width + 256) * 4
    max_rows = max(_SUBLANE, (_VMEM_BUDGET // per_row_bytes) // _SUBLANE * _SUBLANE)
    rows_pad = _round_up(max(rows_needed, 1), _SUBLANE)
    tr = min(max_rows, rows_pad)
    if rows_pad >= 2 * _SUBLANE:                      # enough work -> split >= 2 ways
        tr = min(tr, _round_up((rows_pad + 1) // 2, _SUBLANE))
    return max(_SUBLANE, tr)


def scaled_sinusoidal_embedding(x, inv_freq, scale, pos=None, seq_start_pos=None,
                                *, tile_seq=None, out_dtype=jnp.float32):
    """JAX/Pallas equivalent of ScaledSinusoidalEmbedding.forward.

    x        : any array whose shape[1] defines seq_len (values unused)
    inv_freq : (half_dim,) buffer
    scale    : (1,) parameter
    pos      : optional (seq_len,) positions
    seq_start_pos : optional scalar start offset
        # TODO(synk): batched seq_start_pos (shape (batch,)) would produce a
        # (batch, seq, dim) output in torch; only the scalar case is supported.
    Returns  : (seq_len, dim) in out_dtype (float32 matches the torch module;
               pass bfloat16 to halve writeback bytes on HBM-starved parts).
    """
    seq_len = int(x.shape[1])
    half_dim = int(inv_freq.shape[0])
    dim = 2 * half_dim

    inv_f = inv_freq.astype(jnp.float32)
    scale_f = jnp.asarray(scale, jnp.float32).reshape(())
    if seq_start_pos is not None:
        start_f = jnp.asarray(seq_start_pos, jnp.float32).reshape(())
    else:
        start_f = jnp.float32(0.0)

    if pos is None:
        # ---- affine path: fold G positions per row so lanes are 128-dense ----
        G = 128 // math.gcd(dim, 128)
        lanes = G * dim
        rows_needed = -(-seq_len // G)
        if tile_seq is not None:
            tr = max(_SUBLANE, _round_up(-(-int(tile_seq) // G), _SUBLANE))
        else:
            tr = _pick_tile_rows(rows_needed, lanes)
        grid_n = max(1, -(-rows_needed // tr))
        rows_total = grid_n * tr
        seq_pad = rows_total * G

        # Tiny host-side precompute: O(tile) trig reused by every grid step.
        # (The O(seq) trig is exactly what the factorization removes.)
        lane = jnp.arange(lanes)
        c_lane = lane % dim
        is_sin = c_lane < half_dim
        j_lane = jnp.where(is_sin, c_lane, c_lane - half_dim)
        f_lane = inv_f[j_lane]                                         # (lanes,)
        g_lane = (lane // dim).astype(jnp.float32)
        r = jnp.arange(tr, dtype=jnp.float32)[:, None]                 # (tr, 1)
        a = (r * jnp.float32(G) + g_lane[None, :] - start_f) * f_lane[None, :]
        sa, ca = jnp.sin(a), jnp.cos(a)
        t1 = (jnp.where(is_sin[None, :], sa, ca) * scale_f).astype(jnp.float32)
        t2 = (jnp.where(is_sin[None, :], ca, -sa) * scale_f).astype(jnp.float32)
        stride = (jnp.float32(tr * G) * f_lane).reshape(1, lanes)

        cost = pl.CostEstimate(
            flops=4 * rows_total * lanes,
            transcendentals=2 * lanes * grid_n,
            bytes_accessed=(rows_total * lanes + 2 * tr * lanes + lanes) * 4)

        out = pl.pallas_call(
            _affine_kernel,
            out_shape=jax.ShapeDtypeStruct((rows_total, lanes), out_dtype),
            grid=(grid_n,),
            in_specs=[
                pl.BlockSpec((1, lanes), lambda i: (0, 0)),     # stride (resident)
                pl.BlockSpec((tr, lanes), lambda i: (0, 0)),    # T1 basis (resident)
                pl.BlockSpec((tr, lanes), lambda i: (0, 0)),    # T2 basis (resident)
            ],
            out_specs=pl.BlockSpec((tr, lanes), lambda i: (i, 0)),
            compiler_params=pltpu.CompilerParams(
                dimension_semantics=("parallel",)),
            cost_estimate=cost,
        )(stride, t1, t2)

        out = out.reshape(seq_pad, dim)       # free: row-major un-fold of the lanes
        return out[:seq_len] if seq_pad != seq_len else out

    # ---- user-supplied pos path: exact per-element sin/cos ----
    # TODO(synk): lane-fold this path too (needs an in-kernel lane repeat of
    # pos); for dim % 128 != 0 the output store is still lane-masked here.
    if tile_seq is not None:
        ts = max(_SUBLANE, _round_up(int(tile_seq), _SUBLANE))
    else:
        ts = _pick_tile_rows(seq_len, dim)
    grid_n = max(1, -(-seq_len // ts))
    seq_pad = grid_n * ts

    posf = pos.astype(jnp.float32) - start_f
    posf = jnp.pad(posf, (0, seq_pad - seq_len))
    pos2d = posf.reshape(seq_pad, 1)
    scale1 = scale_f.reshape(1)
    inv2d = inv_f.reshape(1, half_dim)

    cost = pl.CostEstimate(
        flops=3 * seq_pad * dim,
        transcendentals=seq_pad * dim,
        bytes_accessed=(seq_pad * dim + seq_pad + half_dim) * 4)

    out = pl.pallas_call(
        _pos_kernel,
        out_shape=jax.ShapeDtypeStruct((seq_pad, dim), out_dtype),
        grid=(grid_n,),
        in_specs=[
            pl.BlockSpec(memory_space=pltpu.MemorySpace.SMEM),  # scale scalar
            pl.BlockSpec((ts, 1), lambda i: (i, 0)),            # pos
            pl.BlockSpec((1, half_dim), lambda i: (0, 0)),      # inv_freq (resident)
        ],
        out_specs=pl.BlockSpec((ts, dim), lambda i: (i, 0)),
        compiler_params=pltpu.CompilerParams(
            dimension_semantics=("parallel",)),
        cost_estimate=cost,
    )(scale1, pos2d, inv2d)

    return out[:seq_len] if seq_pad != seq_len else out


def _reference(x, inv_freq, scale, pos=None, seq_start_pos=None):
    seq_len = x.shape[1]
    if pos is None:
        pos = jnp.arange(seq_len, dtype=jnp.float32)
    else:
        pos = pos.astype(jnp.float32)
    if seq_start_pos is not None:
        pos = pos - jnp.asarray(seq_start_pos, dtype=jnp.float32)
    emb = jnp.einsum('i,j->ij', pos, inv_freq.astype(jnp.float32))
    emb = jnp.concatenate([jnp.sin(emb), jnp.cos(emb)], axis=-1)
    return emb * jnp.asarray(scale, jnp.float32)


if __name__ == "__main__":
    key = jax.random.PRNGKey(0)

    def make_module(dim, theta=10000.0):
        half = dim // 2
        scale = jnp.ones((1,), jnp.float32) * (dim ** -0.5)            # nn.Parameter
        freq_seq = jnp.arange(half, dtype=jnp.float32) / half
        inv_freq = theta ** (-freq_seq)                                 # buffer
        return scale, inv_freq

    def check(out, ref, tag):
        assert out.shape == ref.shape, (tag, out.shape, ref.shape)
        err = float(jnp.max(jnp.abs(out.astype(jnp.float32) - ref)))
        # angle-addition factorization evaluates the same angle via a slightly
        # different f32 rounding path than the direct product -> a few ulps slack.
        assert err < 2e-5, (tag, err)

    # ---- dim=32 (dim % 128 != 0 -> lane folding with G=4) ----
    dim = 32
    scale, inv_freq = make_module(dim)

    # 1) pos=None, tiny seq (single tile)
    x = jax.random.normal(key, (2, 8, dim), jnp.float32)
    out = jax.block_until_ready(scaled_sinusoidal_embedding(x, inv_freq, scale))
    check(out, _reference(x, inv_freq, scale), "iota/seq8")

    # 2) pos=None, longer seq, auto tiling (grid >= 2)
    seq2 = 200
    x2 = jax.random.normal(key, (2, seq2, dim), jnp.float32)
    out2 = jax.block_until_ready(scaled_sinusoidal_embedding(x2, inv_freq, scale))
    check(out2, _reference(x2, inv_freq, scale), "iota/seq200/auto")

    # 3) pos=None, explicit small tile (multi-tile grid + padded tail)
    out3 = jax.block_until_ready(
        scaled_sinusoidal_embedding(x2, inv_freq, scale, tile_seq=64))
    check(out3, _reference(x2, inv_freq, scale), "iota/seq200/tile64")

    # 4) user-supplied pos + scalar seq_start_pos
    pos_in = jnp.arange(seq2, dtype=jnp.int32)[::-1]
    start = jnp.asarray(3, jnp.int32)
    out4 = jax.block_until_ready(
        scaled_sinusoidal_embedding(x2, inv_freq, scale, pos=pos_in,
                                    seq_start_pos=start, tile_seq=64))
    check(out4, _reference(x2, inv_freq, scale, pos=pos_in, seq_start_pos=start),
          "pos/seq200")

    # ---- dim=256 (dim % 128 == 0 -> G=1; slab stores in the pos path) ----
    dim2 = 256
    scale_b, inv_freq_b = make_module(dim2)
    x3 = jax.random.normal(key, (2, 40, dim2), jnp.float32)
    out5 = jax.block_until_ready(
        scaled_sinusoidal_embedding(x3, inv_freq_b, scale_b))
    check(out5, _reference(x3, inv_freq_b, scale_b), "iota/dim256")

    pos_b = jnp.arange(40, dtype=jnp.int32)
    out6 = jax.block_until_ready(
        scaled_sinusoidal_embedding(x3, inv_freq_b, scale_b, pos=pos_b))
    check(out6, _reference(x3, inv_freq_b, scale_b, pos=pos_b), "pos/dim256")

    print("KERNEL_OK")
</pallas_src>

<mosaic_0001>
module attributes {stable_mosaic.version = 11 : i64} {
  func.func @_affine_kernel(%arg0: i32, %arg1: memref<1x128xf32, #tpu.memory_space<vmem>>, %arg2: memref<16x128xf32, #tpu.memory_space<vmem>>, %arg3: memref<16x128xf32, #tpu.memory_space<vmem>>, %arg4: memref<16x128xf32, #tpu.memory_space<vmem>>) attributes {dimension_semantics = [#tpu.dimension_semantics<parallel>], iteration_bounds = array<i64: 1>, scalar_prefetch = 0 : i64, scratch_operands = 0 : i64, tpu.core_type = #tpu.core_type<tc>, window_params = [{pipeline_mode = #tpu.pipeline_mode<synchronous>, transform_indices = @transform_0, window_bounds = array<i64: 1, 128>}, {pipeline_mode = #tpu.pipeline_mode<synchronous>, transform_indices = @transform_1, window_bounds = array<i64: 16, 128>}, {pipeline_mode = #tpu.pipeline_mode<synchronous>, transform_indices = @transform_2, window_bounds = array<i64: 16, 128>}, {transform_indices = @transform_3, window_bounds = array<i64: 16, 128>}]} {
    %c0 = arith.constant 0 : index
    %c0_0 = arith.constant 0 : index
    %0 = vector.load %arg1[%c0, %c0_0] : memref<1x128xf32, #tpu.memory_space<vmem>>, vector<1x128xf32>
    %1 = arith.sitofp %arg0 : i32 to f32
    %2 = vector.broadcast %1 : f32 to vector<1x128xf32>
    %3 = arith.mulf %0, %2 : vector<1x128xf32>
    %4 = math.cos %3 : vector<1x128xf32>
    %5 = math.sin %3 : vector<1x128xf32>
    %c0_1 = arith.constant 0 : index
    %c0_2 = arith.constant 0 : index
    %6 = vector.load %arg2[%c0_1, %c0_2] : memref<16x128xf32, #tpu.memory_space<vmem>>, vector<16x128xf32>
    %7 = vector.broadcast %4 : vector<1x128xf32> to vector<16x128xf32>
    %8 = arith.mulf %6, %7 : vector<16x128xf32>
    %c0_3 = arith.constant 0 : index
    %c0_4 = arith.constant 0 : index
    %9 = vector.load %arg3[%c0_3, %c0_4] : memref<16x128xf32, #tpu.memory_space<vmem>>, vector<16x128xf32>
    %10 = vector.broadcast %5 : vector<1x128xf32> to vector<16x128xf32>
    %11 = arith.mulf %9, %10 : vector<16x128xf32>
    %12 = arith.addf %8, %11 : vector<16x128xf32>
    %c0_5 = arith.constant 0 : index
    %c0_6 = arith.constant 0 : index
    %13 = vector.load %arg4[%c0_5, %c0_6] : memref<16x128xf32, #tpu.memory_space<vmem>>, vector<16x128xf32>
    tpu.vector_store %arg4[%c0_5, %c0_6], %12 {strides = array<i32>} : memref<16x128xf32, #tpu.memory_space<vmem>>, vector<16x128xf32>,
    return
  }
  func.func @transform_0(%arg0: i32) -> (i32, i32) {
    %c0_i32 = arith.constant 0 : i32
    %c0_i32_0 = arith.constant 0 : i32
    %c0_i32_1 = arith.constant 0 : i32
    return %c0_i32, %c0_i32_0 : i32, i32
  }
  func.func @transform_1(%arg0: i32) -> (i32, i32) {
    %c0_i32 = arith.constant 0 : i32
    %c0_i32_0 = arith.constant 0 : i32
    %c0_i32_1 = arith.constant 0 : i32
    return %c0_i32, %c0_i32_0 : i32, i32
  }
  func.func @transform_2(%arg0: i32) -> (i32, i32) {
    %c0_i32 = arith.constant 0 : i32
    %c0_i32_0 = arith.constant 0 : i32
    %c0_i32_1 = arith.constant 0 : i32
    return %c0_i32, %c0_i32_0 : i32, i32
  }
  func.func @transform_3(%arg0: i32) -> (i32, i32) {
    %c0_i32 = arith.constant 0 : i32
    %c0_i32_0 = arith.constant 0 : i32
    return %arg0, %c0_i32 : i32, i32
  }
}

</mosaic_0001>

<llo_original>
// kernel: tpu_custom_call.1
$region0: #{tpu_custom_call.1}
  #allocation0 [shape = 'u32[]', space=smem, size = 0x4, offset = 0x4, fixed_abs, tag = 'smem constant byte address 0x4 - core index']
  #allocation1 [shape = 'u32[144,128]{1,0:T(1,128)}', space=vmem, size = 0x12000, scoped, tag = 'internal scratch']
  %s0 = inlined_call_operand.hbm [shape: f32[1,128], index: 0, kind: input, shape index: {}]
  %s1 = inlined_call_operand.hbm [shape: f32[16,128], index: 1, kind: input, shape index: {}]
  %s2 = inlined_call_operand.hbm [shape: f32[16,128], index: 2, kind: input, shape index: {}]
  %s3 = inlined_call_operand.hbm [shape: f32[16,128], index: 3, kind: output, shape index: {}]
  %s4 = sld [smem:[#allocation0]]
  $region34: #{tpu_custom_call.1} parent=0
    _
  %s6 = ssub.s32 1, %s4
  %s7 = scalar_select 0, %s6, %s4
  $region1: #{tpu_custom_call.1} parent=0
    #allocation2 [shape = 'u8[512]{0}', space=vmem, size = 0x400, scoped, tag = 'input window, operand 0, single buffered']
    #allocation3 [shape = 's32[1]{0}', space=sflag, size = 0x4, scoped, tag = 'scoped memory for tpu_custom_call.1']
    #allocation4 [shape = 's32[1]{0}', space=sflag, size = 0x4, scoped, tag = 'scoped memory for tpu_custom_call.1']
    #allocation5 [shape = 'u8[8192]{0}', space=vmem, size = 0x2000, scoped, tag = 'input window, operand 1, single buffered']
    #allocation6 [shape = 's32[1]{0}', space=sflag, size = 0x4, scoped, tag = 'scoped memory for tpu_custom_call.1']
    #allocation7 [shape = 'u8[8192]{0}', space=vmem, size = 0x2000, scoped, tag = 'input window, operand 2, single buffered']
    #allocation8 [shape = 'u8[8192]{0}', space=vmem, size = 0x2000, scoped, tag = 'output window, operand 0, single buffered']
    %8 = vsyncpa [#allocation3], 0
    %9 = vsyncpa [#allocation6], 0
    %10 = vsyncpa [#allocation4], 0
    // Predicated region
    $region2: #{tpu_custom_call.1} parent=1 // pred_check
      _
    $region3: #{tpu_custom_call.1} parent=1 // pred_check_branch
      %12 = sbr.rel (0) target = $region5
    $region4: #{tpu_custom_call.1} parent=1 // pred_region
      %s14 = ssub.s32 16, 16
      %15 = vsyncadd [#allocation3], %s14
      %s17 = sshll.u32 [#allocation2], 4
      %s18 = int_to_ptr.vmem [resolvable:$true] %s17
      %20 = dma.hbm_to_vmem [thread:$0]  %s0, 16, %s18, [#allocation3]
    $region5: #{tpu_custom_call.1} parent=1 // pred_fallthru
      _
    // Predicated region
    $region6: #{tpu_custom_call.1} parent=1 // pred_check
      _
    $region7: #{tpu_custom_call.1} parent=1 // pred_check_branch
      %22 = sbr.rel (0) target = $region9
    $region8: #{tpu_custom_call.1} parent=1 // pred_region
      %s24 = ssub.s32 256, 256
      %25 = vsyncadd [#allocation6], %s24
      %s26 = sshll.u32 [#allocation5], 4
      %s27 = int_to_ptr.vmem [resolvable:$true] %s26
      %32 = dma.hbm_to_vmem [thread:$0]  %s1, 256, %s27, [#allocation6], 128, 128, 8
    $region9: #{tpu_custom_call.1} parent=1 // pred_fallthru
      _
    // Predicated region
    $region10: #{tpu_custom_call.1} parent=1 // pred_check
      _
    $region11: #{tpu_custom_call.1} parent=1 // pred_check_branch
      %34 = sbr.rel (0) target = $region13
    $region12: #{tpu_custom_call.1} parent=1 // pred_region
      %s36 = ssub.s32 256, 256
      %37 = vsyncadd [#allocation6], %s36
      %s38 = sshll.u32 [#allocation7], 4
      %s39 = int_to_ptr.vmem [resolvable:$true] %s38
      %44 = dma.hbm_to_vmem [thread:$0]  %s2, 256, %s39, [#allocation6], 128, 128, 8
    $region13: #{tpu_custom_call.1} parent=1 // pred_fallthru
      _
    // Predicated region
    $region14: #{tpu_custom_call.1} parent=1 // pred_check
      _
    $region15: #{tpu_custom_call.1} parent=1 // pred_check_branch
      %46 = sbr.rel (0) target = $region17
    $region16: #{tpu_custom_call.1} parent=1 // pred_region
      %47 = dma.done [#allocation3], 16
    $region17: #{tpu_custom_call.1} parent=1 // pred_fallthru
      _
    // Predicated region
    $region18: #{tpu_custom_call.1} parent=1 // pred_check
      _
    $region19: #{tpu_custom_call.1} parent=1 // pred_check_branch
      %49 = sbr.rel (0) target = $region21
    $region20: #{tpu_custom_call.1} parent=1 // pred_region
      %50 = dma.done [#allocation6], 256
    $region21: #{tpu_custom_call.1} parent=1 // pred_fallthru
      _
    // Predicated region
    $region22: #{tpu_custom_call.1} parent=1 // pred_check
      _
    $region23: #{tpu_custom_call.1} parent=1 // pred_check_branch
      %52 = sbr.rel (0) target = $region25
    $region24: #{tpu_custom_call.1} parent=1 // pred_region
      %53 = dma.done [#allocation6], 256
    $region25: #{tpu_custom_call.1} parent=1 // pred_fallthru
      _
    %v54 = vld [vmem:[#allocation2] sm:$0x1]
    %s55 = scvt.s32.f32 0
    %v56 = vstv %s55
    %v57 = vmul.f32 %v54, %v56
    %v58 = vand.u32 2147483647, %v57
    %vm59 = vcmp.le.f32.partialorder %v58, 0.7853982
    %vm60 = vcmp.lt.s32.totalorder %v57, 0
    %v61 = vand.u32 %v57, 2139095040
    %v62 = vshrl.u32 %v61, 23
    %v63 = vsub.s32 %v62, 127
    %v64 = vand.u32 2147483647, %v57
    %v65 = vand.u32 %v64, 8388607
    %v66 = vor.u32 %v65, 8388608
    %v67 = vsub.s32 0, %v66
    %v68 = vadd.s32 %v63, 1
    %vm69 = vcmp.gt.s32.totalorder %v68, 0
    %v70 = vsel %vm69, %v68, 0
    %v71 = vshrl.u32 %v70, 5
    %v72 = vand.u32 %v70, 31
    %v73 = vsub.s32 32, %v72
    %v74 = vshrl.u32 683565275, %v73
    %v75 = vshll.u32 683565275, %v72
    %v76 = vshrl.u32 2475754826, %v73
    %v77 = vor.u32 %v75, %v76
    %v78 = vshll.u32 2475754826, %v72
    %v79 = vshrl.u32 2131351028, %v73
    %v80 = vor.u32 %v78, %v79
    %v81 = vshll.u32 2131351028, %v72
    %v82 = vshrl.u32 2102212464, %v73
    %v83 = vor.u32 %v81, %v82
    %v84 = vshll.u32 2102212464, %v72
    %v85 = vshrl.u32 920167782, %v73
    %v86 = vor.u32 %v84, %v85
    %v87 = vshll.u32 920167782, %v72
    %v88 = vshrl.u32 1326507024, %v73
    %v89 = vor.u32 %v87, %v88
    %vm90 = vcmp.lt.s32.totalorder %v71, 1
    %vm91 = vcmp.lt.s32.totalorder %v71, 2
    %vm92 = vcmp.lt.s32.totalorder %v71, 3
    %vm93 = vcmp.lt.s32.totalorder %v71, 4
    %v94 = vsel %vm90, %v74, %v77
    %v95 = vsel %vm93, %v83, 2102212464
    %v96 = vsel %vm92, %v80, %v95
    %v97 = vsel %vm91, %v94, %v96
    %v98 = vsel %vm90, %v77, %v80
    %v99 = vsel %vm93, %v86, 920167782
    %v100 = vsel %vm92, %v83, %v99
    %v101 = vsel %vm91, %v98, %v100
    %v102 = vsel %vm90, %v80, %v83
    %v103 = vsel %vm93, %v89, 1326507024
    %v104 = vsel %vm92, %v86, %v103
    %v105 = vsel %vm91, %v102, %v104
    %v106 = vshll.u32 %v66, 8
    %v107 = vmul.u32.u64.compose %v106, %v105
    %v108 = vextract.low.u32 %v107
    %v109 = vextract.high.u32 %v107
    %v110 = vmul.u32.u64.compose %v106, %v101
    %v111 = vextract.low.u32 %v110
    %v112 = vextract.high.u32 %v110
    %v113 = vmul.u32 %v106, %v97
    %v114 = vadd.s32 %v109, %v111
    %vm115 = vc.u32 %v109, %v111
    %v116 = vadd.s32 %v112, 1
    %v117 = vsel %vm115, %v116, %v112
    %v118 = vadd.s32 %v113, %v117
    %v119 = vadd.s32 %v118, 536870912
    %v120 = vshrl.u32 %v119, 30
    %v121 = vshll.u32 %v120, 30
    %v122 = vsub.s32 %v118, %v121
    %vm123 = vcmp.lt.s32.totalorder %v122, 0
    %v124 = vsub.s32 0, %v122
    %v125 = vsel %vm123, %v124, %v122
    %v126 = vclz %v125
    %v127 = vsub.s32 %v126, 2
    %vm128 = vcmp.gt.s32.totalorder 0, %v127
    %v129 = vsel %vm128, 0, %v127
    %v130 = vsub.s32 32, %v129
    %v131 = vshll.u32 %v122, %v129
    %v132 = vshrl.u32 %v114, %v130
    %v133 = vor.u32 %v131, %v132
    %v134 = vsub.s32 4294967266, %v129
    %v135 = vadd.s32 %v134, 127
    %v136 = vshll.u32 %v135, 23
    %v137 = vor.u32 4788187, %v136
    %v138 = vand.u32 2147483647, %v137
    %v140 = vcvt.s32.f32 %v133
    %v141 = vmul.f32 %v140, %v138
    %v142 = vxor.u32 %v141, 2147483648
    %v143 = vsel %vm60, %v142, %v141
    %v144 = vsub.s32 4, %v120
    %v145 = vsel %vm60, %v144, %v120
    %v146 = vsel %vm59, %v57, %v143
    %v147 = vsel %vm59, 0, %v145
    %v148 = vcosq.f32.pop %v146
    %v149 = vsinq.f32.pop %v146
    %vm150 = vweird.f32 %v57
    %v151 = vand.u32 %v147, 3
    %vm152 = vcmp.lt.s32.totalorder %v151, 2
    %vm153 = vcmp.eq.s32.totalorder %v151, 0
    %v154 = vxor.u32 %v149, 2147483648
    %v155 = vsel %vm153, %v148, %v154
    %vm156 = vcmp.eq.s32.totalorder %v151, 2
    %v157 = vxor.u32 %v148, 2147483648
    %v158 = vsel %vm156, %v157, %v149
    %v159 = vsel %vm152, %v155, %v158
    %v160 = vsel %vm150, nan, %v159
    %v161 = vand.u32 2147483647, %v57
    %vm162 = vcmp.le.f32.partialorder %v161, 0.7853982
    %vm163 = vcmp.lt.s32.totalorder %v57, 0
    %v164 = vand.u32 %v57, 2139095040
    %v165 = vshrl.u32 %v164, 23
    %v166 = vsub.s32 %v165, 127
    %v167 = vand.u32 2147483647, %v57
    %v168 = vand.u32 %v167, 8388607
    %v169 = vor.u32 %v168, 8388608
    %v170 = vsub.s32 0, %v169
    %v171 = vadd.s32 %v166, 1
    %vm172 = vcmp.gt.s32.totalorder %v171, 0
    %v173 = vsel %vm172, %v171, 0
    %v174 = vshrl.u32 %v173, 5
    %v175 = vand.u32 %v173, 31
    %v176 = vsub.s32 32, %v175
    %v177 = vshrl.u32 683565275, %v176
    %v178 = vshll.u32 683565275, %v175
    %v179 = vshrl.u32 2475754826, %v176
    %v180 = vor.u32 %v178, %v179
    %v181 = vshll.u32 2475754826, %v175
    %v182 = vshrl.u32 2131351028, %v176
    %v183 = vor.u32 %v181, %v182
    %v184 = vshll.u32 2131351028, %v175
    %v185 = vshrl.u32 2102212464, %v176
    %v186 = vor.u32 %v184, %v185
    %v187 = vshll.u32 2102212464, %v175
    %v188 = vshrl.u32 920167782, %v176
    %v189 = vor.u32 %v187, %v188
    %v190 = vshll.u32 920167782, %v175
    %v191 = vshrl.u32 1326507024, %v176
    %v192 = vor.u32 %v190, %v191
    %vm193 = vcmp.lt.s32.totalorder %v174, 1
    %vm194 = vcmp.lt.s32.totalorder %v174, 2
    %vm195 = vcmp.lt.s32.totalorder %v174, 3
    %vm196 = vcmp.lt.s32.totalorder %v174, 4
    %v197 = vsel %vm193, %v177, %v180
    %v198 = vsel %vm196, %v186, 2102212464
    %v199 = vsel %vm195, %v183, %v198
    %v200 = vsel %vm194, %v197, %v199
    %v201 = vsel %vm193, %v180, %v183
    %v202 = vsel %vm196, %v189, 920167782
    %v203 = vsel %vm195, %v186, %v202
    %v204 = vsel %vm194, %v201, %v203
    %v205 = vsel %vm193, %v183, %v186
    %v206 = vsel %vm196, %v192, 1326507024
    %v207 = vsel %vm195, %v189, %v206
    %v208 = vsel %vm194, %v205, %v207
    %v209 = vshll.u32 %v169, 8
    %v210 = vmul.u32.u64.compose %v209, %v208
    %v211 = vextract.low.u32 %v210
    %v212 = vextract.high.u32 %v210
    %v213 = vmul.u32.u64.compose %v209, %v204
    %v214 = vextract.low.u32 %v213
    %v215 = vextract.high.u32 %v213
    %v216 = vmul.u32 %v209, %v200
    %v217 = vadd.s32 %v212, %v214
    %vm218 = vc.u32 %v212, %v214
    %v219 = vadd.s32 %v215, 1
    %v220 = vsel %vm218, %v219, %v215
    %v221 = vadd.s32 %v216, %v220
    %v222 = vadd.s32 %v221, 536870912
    %v223 = vshrl.u32 %v222, 30
    %v224 = vshll.u32 %v223, 30
    %v225 = vsub.s32 %v221, %v224
    %vm226 = vcmp.lt.s32.totalorder %v225, 0
    %v227 = vsub.s32 0, %v225
    %v228 = vsel %vm226, %v227, %v225
    %v229 = vclz %v228
    %v230 = vsub.s32 %v229, 2
    %vm231 = vcmp.gt.s32.totalorder 0, %v230
    %v232 = vsel %vm231, 0, %v230
    %v233 = vsub.s32 32, %v232
    %v234 = vshll.u32 %v225, %v232
    %v235 = vshrl.u32 %v217, %v233
    %v236 = vor.u32 %v234, %v235
    %v237 = vsub.s32 4294967266, %v232
    %v238 = vadd.s32 %v237, 127
    %v239 = vshll.u32 %v238, 23
    %v240 = vor.u32 4788187, %v239
    %v241 = vand.u32 2147483647, %v240
    %v243 = vcvt.s32.f32 %v236
    %v244 = vmul.f32 %v243, %v241
    %v245 = vxor.u32 %v244, 2147483648
    %v246 = vsel %vm163, %v245, %v244
    %v247 = vsub.s32 4, %v223
    %v248 = vsel %vm163, %v247, %v223
    %v249 = vsel %vm162, %v57, %v246
    %v250 = vsel %vm162, 0, %v248
    %v251 = vcosq.f32.pop %v249
    %v252 = vsinq.f32.pop %v249
    %vm253 = vweird.f32 %v57
    %v254 = vadd.s32 %v250, 3
    %v255 = vand.u32 %v254, 3
    %vm256 = vcmp.lt.s32.totalorder %v255, 2
    %vm257 = vcmp.eq.s32.totalorder %v255, 0
    %v258 = vxor.u32 %v252, 2147483648
    %v259 = vsel %vm257, %v251, %v258
    %vm260 = vcmp.eq.s32.totalorder %v255, 2
    %v261 = vxor.u32 %v251, 2147483648
    %v262 = vsel %vm260, %v261, %v252
    %v263 = vsel %vm256, %v259, %v262
    %v264 = vsel %vm253, nan, %v263
    %v265 = vld [vmem:[#allocation5] sm:$0xff]
    %v266 = vld [vmem:[#allocation5 + $0x8] sm:$0xff]
    %v268 = vlaneseq
    %v269 = vshrl.u32 %v268, 7
    %v270 = vsub.s32 0, %v269
    %v271 = vrot.slane %v160, %v270
    %v273 = vmul.f32 %v265, %v271
    %v274 = vmul.f32 %v266, %v271
    %v275 = vld [vmem:[#allocation7] sm:$0xff]
    %v276 = vld [vmem:[#allocation7 + $0x8] sm:$0xff]
    %v278 = vlaneseq
    %v279 = vshrl.u32 %v278, 7
    %v280 = vsub.s32 0, %v279
    %v281 = vrot.slane %v264, %v280
    %v283 = vmul.f32 %v275, %v281
    %v284 = vmul.f32 %v276, %v281
    %v285 = vadd.f32 %v273, %v283
    %v286 = vadd.f32 %v274, %v284
    %287 = vst [vmem:[#allocation8] sm:$0xff] %v285
    %288 = vst [vmem:[#allocation8 + $0x8] sm:$0xff] %v286
    // Predicated region
    $region26: #{tpu_custom_call.1} parent=1 // pred_check
      _
    $region27: #{tpu_custom_call.1} parent=1 // pred_check_branch
      %290 = sbr.rel (0) target = $region29
    $region28: #{tpu_custom_call.1} parent=1 // pred_region
      %s292 = ssub.s32 256, 256
      %293 = vsyncadd [#allocation4], %s292
      %s294 = sshll.u32 [#allocation8], 4
      %s295 = int_to_ptr.vmem [resolvable:$true] %s294
      %300 = dma.vmem_to_hbm [thread:$0]  %s295, 256, %s3, [#allocation4], 128, 128, 8
    $region29: #{tpu_custom_call.1} parent=1 // pred_fallthru
      _
    // Predicated region
    $region30: #{tpu_custom_call.1} parent=1 // pred_check
      _
    $region31: #{tpu_custom_call.1} parent=1 // pred_check_branch
      %302 = sbr.rel (0) target = $region33
    $region32: #{tpu_custom_call.1} parent=1 // pred_region
      %303 = dma.done [#allocation4], 256
    $region33: #{tpu_custom_call.1} parent=1 // pred_fallthru
      _
    %304 = vsyncpa [#allocation3], 1
    %305 = vsyncpa [#allocation6], 1
    %306 = vsyncpa [#allocation4], 1

</llo_original>
